<compile_context>
chip_gen: v5e
topology: v5e:2x2
jax: 0.10.0
libtpu: 0.0.40
codegen_flags: <defaults>
</compile_context>

<pallas_src>
import functools

import jax
import jax.numpy as jnp
from jax.experimental import pallas as pl
from jax.experimental.pallas import tpu as pltpu

LANE = 128        # last-dim (lane) tiling unit
SUBLANE_BF16 = 16  # bf16 packs 16 rows per vreg


def _round_up(n, m):
    return ((n + m - 1) // m) * m


# ----------------------------------------------------------------------------
# Fused Pallas kernel: whole AE forward (chain of Linear + optional ReLU)
# Activations never leave VMEM between layers.
# ----------------------------------------------------------------------------
def _ae_fused_kernel(*refs, relu_flags):
    # refs = (x_ref, w1_ref, b1_ref, ..., wN_ref, bN_ref, o_ref)
    # x_ref: (TB, D0p) bf16   wi_ref: (D_{i-1}p, D_ip) bf16   bi_ref: (1, D_ip) f32
    x_ref = refs[0]
    o_ref = refs[-1]
    param_refs = refs[1:-1]
    n_layers = len(relu_flags)

    h = x_ref[...]  # bf16
    for i, relu in enumerate(relu_flags):
        w = param_refs[2 * i][...]
        b = param_refs[2 * i + 1][...]
        acc = jnp.dot(h, w, preferred_element_type=jnp.float32) + b  # f32 accumulate
        if relu:
            acc = jnp.maximum(acc, 0.0)
        if i < n_layers - 1:
            h = acc.astype(jnp.bfloat16)  # bf16 operands for the next MXU pass
        else:
            h = acc
    o_ref[...] = h.astype(o_ref.dtype)


def ae_forward_pallas(x, padded_weights, padded_biases, relu_flags, out_dim,
                      batch_tile=128):
    """Run the fused, batch-tiled AE kernel.

    x: (B, Din) logical input (any float dtype).
    padded_weights[i]: (D_{i-1}p, D_ip) bf16, zero padded.
    padded_biases[i]:  (1, D_ip) f32, zero padded.
    Returns (B, out_dim) float32.
    """
    B, Din = x.shape
    d0p = padded_weights[0].shape[0]
    dLp = padded_weights[-1].shape[1]

    # Batch tile: multiple of 16 sublanes (bf16), capped at `batch_tile`.
    tb = min(batch_tile, _round_up(max(B, 1), SUBLANE_BF16))
    Bp = _round_up(max(B, 1), tb)
    n_tiles = Bp // tb

    # Pad + cast the input once (padded feature lanes stay zero; padded batch
    # rows are cropped after the kernel).
    x_p = jnp.zeros((Bp, d0p), jnp.bfloat16).at[:B, :Din].set(
        x.astype(jnp.bfloat16))

    operands = [x_p]
    in_specs = [pl.BlockSpec((tb, d0p), lambda i: (i, 0))]
    for w, b in zip(padded_weights, padded_biases):
        operands += [w, b]
        # Weights / biases: constant index_map -> DMA'd once, VMEM-resident.
        in_specs.append(pl.BlockSpec(w.shape, lambda i: (0, 0)))
        in_specs.append(pl.BlockSpec(b.shape, lambda i: (0, 0)))

    kernel = functools.partial(_ae_fused_kernel, relu_flags=tuple(relu_flags))

    out_p = pl.pallas_call(
        kernel,
        out_shape=jax.ShapeDtypeStruct((Bp, dLp), jnp.float32),
        grid=(n_tiles,),
        in_specs=in_specs,
        out_specs=pl.BlockSpec((tb, dLp), lambda i: (i, 0)),
        compiler_params=pltpu.CompilerParams(
            dimension_semantics=("parallel",)),
    )(*operands)

    return out_p[:B, :out_dim]


# ----------------------------------------------------------------------------
# Parameter construction (mirrors AE_encoder / AE __init__), weights stored
# as (in, out) -- already transposed from the torch (out, in) layout.
# ----------------------------------------------------------------------------
def _init_linear(key, in_dim, out_dim, dtype=jnp.float32):
    kw, kb = jax.random.split(key)
    bound = 1.0 / float(in_dim) ** 0.5
    w = jax.random.uniform(kw, (in_dim, out_dim), dtype, -bound, bound)
    b = jax.random.uniform(kb, (out_dim,), dtype, -bound, bound)
    return w, b


def make_encoder_params(key, input_dim, hidden_dims, latent_dim):
    """[Linear(in,h1)+ReLU, ..., Linear(h_last, latent)] — ReLU on hidden layers only."""
    params = []
    d = input_dim
    dims = list(hidden_dims) + [latent_dim]
    keys = jax.random.split(key, len(dims))
    for i, h in enumerate(dims):
        w, b = _init_linear(keys[i], d, h)
        relu = i < len(hidden_dims)
        params.append((w, b, relu))
        d = h
    return params


def make_ae_params(key, input_dim, hidden_dims, latent_dim, output_dim):
    k_enc, k_dec = jax.random.split(key)
    enc = make_encoder_params(k_enc, input_dim, hidden_dims, latent_dim)
    # Decoder is literally AE_encoder(latent_dim, hidden_dims, output_dim).
    dec = make_encoder_params(k_dec, latent_dim, hidden_dims, output_dim)
    return enc + dec  # flat list of (w(in,out), b, relu)


def fold_no_relu_pairs(layers):
    """Fold consecutive (Linear no-ReLU) -> (Linear) pairs into one Linear.

    Exact algebra (no nonlinearity between them): for h@W1+b1 followed by
    (.)@W2+b2, W' = W1@W2 and b' = b1@W2 + b2. The encoder's latent layer and
    the decoder's first layer form exactly one such pair.
    """
    folded = []
    i = 0
    while i < len(layers):
        w, b, relu = layers[i]
        if (not relu) and (i + 1 < len(layers)):
            w2, b2, relu2 = layers[i + 1]
            w = w @ w2
            b = b @ w2 + b2
            relu = relu2
            i += 2
        else:
            i += 1
        folded.append((w, b, relu))
    return folded


def pad_ae_params(layers):
    """Zero-pad every feature dim up to a multiple of 128 and cast weights to
    bf16 (done ONCE, offline). Biases stay f32 (added to the f32 accumulator)."""
    dims = [layers[0][0].shape[0]] + [w.shape[1] for (w, _, _) in layers]
    dims_p = [_round_up(d, LANE) for d in dims]
    padded_w, padded_b, relu_flags = [], [], []
    for i, (w, b, relu) in enumerate(layers):
        din, dout = w.shape
        wp = jnp.zeros((dims_p[i], dims_p[i + 1]), jnp.bfloat16)
        wp = wp.at[:din, :dout].set(w.astype(jnp.bfloat16))
        bp = jnp.zeros((1, dims_p[i + 1]), jnp.float32)
        bp = bp.at[0, :dout].set(b.astype(jnp.float32))
        padded_w.append(wp)
        padded_b.append(bp)
        relu_flags.append(relu)
    return padded_w, padded_b, tuple(relu_flags)


# ----------------------------------------------------------------------------
# Pure-JAX float32 reference of the same math (unpadded, unfolded)
# ----------------------------------------------------------------------------
def ae_forward_ref(x, layers):
    h = x
    for (w, b, relu) in layers:
        h = h @ w + b
        if relu:
            h = jnp.maximum(h, 0.0)
    return h


if __name__ == "__main__":
    # Small shapes consistent with the module's forward (x: (batch, input_dim)).
    batch = 32
    input_dim = 16
    hidden_dims = [32, 24]
    latent_dim = 8
    output_dim = 16

    key = jax.random.PRNGKey(0)
    k_x, k_p = jax.random.split(key)
    x = jax.random.normal(k_x, (batch, input_dim), jnp.float32)

    layers = make_ae_params(k_p, input_dim, hidden_dims, latent_dim, output_dim)

    # Offline prep: fold the no-ReLU latent->decoder pair, pad, cast to bf16.
    folded = fold_no_relu_pairs(layers)
    padded_w, padded_b, relu_flags = pad_ae_params(folded)

    # batch_tile=16 here -> grid=(2,), exercising the pipelined batch grid.
    out = ae_forward_pallas(x, padded_w, padded_b, relu_flags, output_dim,
                            batch_tile=16)
    out = jax.block_until_ready(out)

    ref = jax.block_until_ready(ae_forward_ref(x, layers))
    assert out.shape == (batch, output_dim)
    # bf16 operands (f32 accumulate) -> looser tolerance than pure f32.
    assert jnp.allclose(out, ref, atol=5e-2, rtol=5e-2), (
        float(jnp.max(jnp.abs(out - ref))))

    print("KERNEL_OK")
</pallas_src>

<mosaic_0001>
module attributes {stable_mosaic.version = 11 : i64} {
  func.func @_ae_fused_kernel(%arg0: i32, %arg1: memref<16x128xbf16, #tpu.memory_space<vmem>>, %arg2: memref<128x128xbf16, #tpu.memory_space<vmem>>, %arg3: memref<1x128xf32, #tpu.memory_space<vmem>>, %arg4: memref<128x128xbf16, #tpu.memory_space<vmem>>, %arg5: memref<1x128xf32, #tpu.memory_space<vmem>>, %arg6: memref<128x128xbf16, #tpu.memory_space<vmem>>, %arg7: memref<1x128xf32, #tpu.memory_space<vmem>>, %arg8: memref<128x128xbf16, #tpu.memory_space<vmem>>, %arg9: memref<1x128xf32, #tpu.memory_space<vmem>>, %arg10: memref<128x128xbf16, #tpu.memory_space<vmem>>, %arg11: memref<1x128xf32, #tpu.memory_space<vmem>>, %arg12: memref<16x128xf32, #tpu.memory_space<vmem>>) attributes {dimension_semantics = [#tpu.dimension_semantics<parallel>], iteration_bounds = array<i64: 2>, scalar_prefetch = 0 : i64, scratch_operands = 0 : i64, tpu.core_type = #tpu.core_type<tc>, window_params = [{transform_indices = @transform_0, window_bounds = array<i64: 16, 128>}, {pipeline_mode = #tpu.pipeline_mode<synchronous>, transform_indices = @transform_1, window_bounds = array<i64: 128, 128>}, {pipeline_mode = #tpu.pipeline_mode<synchronous>, transform_indices = @transform_2, window_bounds = array<i64: 1, 128>}, {pipeline_mode = #tpu.pipeline_mode<synchronous>, transform_indices = @transform_3, window_bounds = array<i64: 128, 128>}, {pipeline_mode = #tpu.pipeline_mode<synchronous>, transform_indices = @transform_4, window_bounds = array<i64: 1, 128>}, {pipeline_mode = #tpu.pipeline_mode<synchronous>, transform_indices = @transform_5, window_bounds = array<i64: 128, 128>}, {pipeline_mode = #tpu.pipeline_mode<synchronous>, transform_indices = @transform_6, window_bounds = array<i64: 1, 128>}, {pipeline_mode = #tpu.pipeline_mode<synchronous>, transform_indices = @transform_7, window_bounds = array<i64: 128, 128>}, {pipeline_mode = #tpu.pipeline_mode<synchronous>, transform_indices = @transform_8, window_bounds = array<i64: 1, 128>}, {pipeline_mode = #tpu.pipeline_mode<synchronous>, transform_indices = @transform_9, window_bounds = array<i64: 128, 128>}, {pipeline_mode = #tpu.pipeline_mode<synchronous>, transform_indices = @transform_10, window_bounds = array<i64: 1, 128>}, {transform_indices = @transform_11, window_bounds = array<i64: 16, 128>}]} {
    %c0 = arith.constant 0 : index
    %c0_0 = arith.constant 0 : index
    %0 = vector.load %arg1[%c0, %c0_0] : memref<16x128xbf16, #tpu.memory_space<vmem>>, vector<16x128xbf16>
    %c0_1 = arith.constant 0 : index
    %c0_2 = arith.constant 0 : index
    %1 = vector.load %arg2[%c0_1, %c0_2] : memref<128x128xbf16, #tpu.memory_space<vmem>>, vector<128x128xbf16>
    %c0_3 = arith.constant 0 : index
    %c0_4 = arith.constant 0 : index
    %2 = vector.load %arg3[%c0_3, %c0_4] : memref<1x128xf32, #tpu.memory_space<vmem>>, vector<1x128xf32>
    %cst = arith.constant dense<0.000000e+00> : vector<16x128xf32>
    %3 = tpu.matmul %0, %1, %cst {dimension_numbers = #tpu.dot_dimension_numbers<[1], [0], [0], [1], [0, 0, 1, 1], [], []>} : vector<16x128xbf16>, vector<128x128xbf16>, vector<16x128xf32> -> vector<16x128xf32>
    %4 = vector.broadcast %2 : vector<1x128xf32> to vector<16x128xf32>
    %5 = arith.addf %3, %4 : vector<16x128xf32>
    %cst_5 = arith.constant 0.000000e+00 : f32
    %6 = vector.broadcast %cst_5 : f32 to vector<16x128xf32>
    %7 = arith.maximumf %5, %6 : vector<16x128xf32>
    %8 = arith.truncf %7 : vector<16x128xf32> to vector<16x128xbf16>
    %c0_6 = arith.constant 0 : index
    %c0_7 = arith.constant 0 : index
    %9 = vector.load %arg4[%c0_6, %c0_7] : memref<128x128xbf16, #tpu.memory_space<vmem>>, vector<128x128xbf16>
    %c0_8 = arith.constant 0 : index
    %c0_9 = arith.constant 0 : index
    %10 = vector.load %arg5[%c0_8, %c0_9] : memref<1x128xf32, #tpu.memory_space<vmem>>, vector<1x128xf32>
    %cst_10 = arith.constant dense<0.000000e+00> : vector<16x128xf32>
    %11 = tpu.matmul %8, %9, %cst_10 {dimension_numbers = #tpu.dot_dimension_numbers<[1], [0], [0], [1], [0, 0, 1, 1], [], []>} : vector<16x128xbf16>, vector<128x128xbf16>, vector<16x128xf32> -> vector<16x128xf32>
    %12 = vector.broadcast %10 : vector<1x128xf32> to vector<16x128xf32>
    %13 = arith.addf %11, %12 : vector<16x128xf32>
    %cst_11 = arith.constant 0.000000e+00 : f32
    %14 = vector.broadcast %cst_11 : f32 to vector<16x128xf32>
    %15 = arith.maximumf %13, %14 : vector<16x128xf32>
    %16 = arith.truncf %15 : vector<16x128xf32> to vector<16x128xbf16>
    %c0_12 = arith.constant 0 : index
    %c0_13 = arith.constant 0 : index
    %17 = vector.load %arg6[%c0_12, %c0_13] : memref<128x128xbf16, #tpu.memory_space<vmem>>, vector<128x128xbf16>
    %c0_14 = arith.constant 0 : index
    %c0_15 = arith.constant 0 : index
    %18 = vector.load %arg7[%c0_14, %c0_15] : memref<1x128xf32, #tpu.memory_space<vmem>>, vector<1x128xf32>
    %cst_16 = arith.constant dense<0.000000e+00> : vector<16x128xf32>
    %19 = tpu.matmul %16, %17, %cst_16 {dimension_numbers = #tpu.dot_dimension_numbers<[1], [0], [0], [1], [0, 0, 1, 1], [], []>} : vector<16x128xbf16>, vector<128x128xbf16>, vector<16x128xf32> -> vector<16x128xf32>
    %20 = vector.broadcast %18 : vector<1x128xf32> to vector<16x128xf32>
    %21 = arith.addf %19, %20 : vector<16x128xf32>
    %cst_17 = arith.constant 0.000000e+00 : f32
    %22 = vector.broadcast %cst_17 : f32 to vector<16x128xf32>
    %23 = arith.maximumf %21, %22 : vector<16x128xf32>
    %24 = arith.truncf %23 : vector<16x128xf32> to vector<16x128xbf16>
    %c0_18 = arith.constant 0 : index
    %c0_19 = arith.constant 0 : index
    %25 = vector.load %arg8[%c0_18, %c0_19] : memref<128x128xbf16, #tpu.memory_space<vmem>>, vector<128x128xbf16>
    %c0_20 = arith.constant 0 : index
    %c0_21 = arith.constant 0 : index
    %26 = vector.load %arg9[%c0_20, %c0_21] : memref<1x128xf32, #tpu.memory_space<vmem>>, vector<1x128xf32>
    %cst_22 = arith.constant dense<0.000000e+00> : vector<16x128xf32>
    %27 = tpu.matmul %24, %25, %cst_22 {dimension_numbers = #tpu.dot_dimension_numbers<[1], [0], [0], [1], [0, 0, 1, 1], [], []>} : vector<16x128xbf16>, vector<128x128xbf16>, vector<16x128xf32> -> vector<16x128xf32>
    %28 = vector.broadcast %26 : vector<1x128xf32> to vector<16x128xf32>
    %29 = arith.addf %27, %28 : vector<16x128xf32>
    %cst_23 = arith.constant 0.000000e+00 : f32
    %30 = vector.broadcast %cst_23 : f32 to vector<16x128xf32>
    %31 = arith.maximumf %29, %30 : vector<16x128xf32>
    %32 = arith.truncf %31 : vector<16x128xf32> to vector<16x128xbf16>
    %c0_24 = arith.constant 0 : index
    %c0_25 = arith.constant 0 : index
    %33 = vector.load %arg10[%c0_24, %c0_25] : memref<128x128xbf16, #tpu.memory_space<vmem>>, vector<128x128xbf16>
    %c0_26 = arith.constant 0 : index
    %c0_27 = arith.constant 0 : index
    %34 = vector.load %arg11[%c0_26, %c0_27] : memref<1x128xf32, #tpu.memory_space<vmem>>, vector<1x128xf32>
    %cst_28 = arith.constant dense<0.000000e+00> : vector<16x128xf32>
    %35 = tpu.matmul %32, %33, %cst_28 {dimension_numbers = #tpu.dot_dimension_numbers<[1], [0], [0], [1], [0, 0, 1, 1], [], []>} : vector<16x128xbf16>, vector<128x128xbf16>, vector<16x128xf32> -> vector<16x128xf32>
    %36 = vector.broadcast %34 : vector<1x128xf32> to vector<16x128xf32>
    %37 = arith.addf %35, %36 : vector<16x128xf32>
    %c0_29 = arith.constant 0 : index
    %c0_30 = arith.constant 0 : index
    %38 = vector.load %arg12[%c0_29, %c0_30] : memref<16x128xf32, #tpu.memory_space<vmem>>, vector<16x128xf32>
    tpu.vector_store %arg12[%c0_29, %c0_30], %37 {strides = array<i32>} : memref<16x128xf32, #tpu.memory_space<vmem>>, vector<16x128xf32>,
    return
  }
  func.func @transform_0(%arg0: i32) -> (i32, i32) {
    %c0_i32 = arith.constant 0 : i32
    %c0_i32_0 = arith.constant 0 : i32
    return %arg0, %c0_i32 : i32, i32
  }
  func.func @transform_1(%arg0: i32) -> (i32, i32) {
    %c0_i32 = arith.constant 0 : i32
    %c0_i32_0 = arith.constant 0 : i32
    %c0_i32_1 = arith.constant 0 : i32
    return %c0_i32, %c0_i32_0 : i32, i32
  }
  func.func @transform_2(%arg0: i32) -> (i32, i32) {
    %c0_i32 = arith.constant 0 : i32
    %c0_i32_0 = arith.constant 0 : i32
    %c0_i32_1 = arith.constant 0 : i32
    return %c0_i32, %c0_i32_0 : i32, i32
  }
  func.func @transform_3(%arg0: i32) -> (i32, i32) {
    %c0_i32 = arith.constant 0 : i32
    %c0_i32_0 = arith.constant 0 : i32
    %c0_i32_1 = arith.constant 0 : i32
    return %c0_i32, %c0_i32_0 : i32, i32
  }
  func.func @transform_4(%arg0: i32) -> (i32, i32) {
    %c0_i32 = arith.constant 0 : i32
    %c0_i32_0 = arith.constant 0 : i32
    %c0_i32_1 = arith.constant 0 : i32
    return %c0_i32, %c0_i32_0 : i32, i32
  }
  func.func @transform_5(%arg0: i32) -> (i32, i32) {
    %c0_i32 = arith.constant 0 : i32
    %c0_i32_0 = arith.constant 0 : i32
    %c0_i32_1 = arith.constant 0 : i32
    return %c0_i32, %c0_i32_0 : i32, i32
  }
  func.func @transform_6(%arg0: i32) -> (i32, i32) {
    %c0_i32 = arith.constant 0 : i32
    %c0_i32_0 = arith.constant 0 : i32
    %c0_i32_1 = arith.constant 0 : i32
    return %c0_i32, %c0_i32_0 : i32, i32
  }
  func.func @transform_7(%arg0: i32) -> (i32, i32) {
    %c0_i32 = arith.constant 0 : i32
    %c0_i32_0 = arith.constant 0 : i32
    %c0_i32_1 = arith.constant 0 : i32
    return %c0_i32, %c0_i32_0 : i32, i32
  }
  func.func @transform_8(%arg0: i32) -> (i32, i32) {
    %c0_i32 = arith.constant 0 : i32
    %c0_i32_0 = arith.constant 0 : i32
    %c0_i32_1 = arith.constant 0 : i32
    return %c0_i32, %c0_i32_0 : i32, i32
  }
  func.func @transform_9(%arg0: i32) -> (i32, i32) {
    %c0_i32 = arith.constant 0 : i32
    %c0_i32_0 = arith.constant 0 : i32
    %c0_i32_1 = arith.constant 0 : i32
    return %c0_i32, %c0_i32_0 : i32, i32
  }
  func.func @transform_10(%arg0: i32) -> (i32, i32) {
    %c0_i32 = arith.constant 0 : i32
    %c0_i32_0 = arith.constant 0 : i32
    %c0_i32_1 = arith.constant 0 : i32
    return %c0_i32, %c0_i32_0 : i32, i32
  }
  func.func @transform_11(%arg0: i32) -> (i32, i32) {
    %c0_i32 = arith.constant 0 : i32
    %c0_i32_0 = arith.constant 0 : i32
    return %arg0, %c0_i32 : i32, i32
  }
}

</mosaic_0001>

<llo_original>
// kernel: tpu_custom_call.1
$region0: #{tpu_custom_call.1}
  #allocation0 [shape = 'u32[]', space=smem, size = 0x4, offset = 0x4, fixed_abs, tag = 'smem constant byte address 0x4 - core index']
  #allocation1 [shape = 'u32[72,128]{1,0:T(1,128)}', space=vmem, size = 0x9000, scoped, tag = 'internal scratch']
  %s0 = inlined_call_operand.hbm [shape: bf16[32,128], index: 0, kind: input, shape index: {}]
  %s1 = inlined_call_operand.hbm [shape: bf16[128,128], index: 1, kind: input, shape index: {}]
  %s2 = inlined_call_operand.vmem [shape: f32[1,128], index: 2, kind: input, shape index: {}]
  %s3 = inlined_call_operand.hbm [shape: bf16[128,128], index: 3, kind: input, shape index: {}]
  %s4 = inlined_call_operand.vmem [shape: f32[1,128], index: 4, kind: input, shape index: {}]
  %s5 = inlined_call_operand.hbm [shape: bf16[128,128], index: 5, kind: input, shape index: {}]
  %s6 = inlined_call_operand.vmem [shape: f32[1,128], index: 6, kind: input, shape index: {}]
  %s7 = inlined_call_operand.hbm [shape: bf16[128,128], index: 7, kind: input, shape index: {}]
  %s8 = inlined_call_operand.vmem [shape: f32[1,128], index: 8, kind: input, shape index: {}]
  %s9 = inlined_call_operand.hbm [shape: bf16[128,128], index: 9, kind: input, shape index: {}]
  %s10 = inlined_call_operand.vmem [shape: f32[1,128], index: 10, kind: input, shape index: {}]
  %s11 = inlined_call_operand.hbm [shape: f32[32,128], index: 11, kind: output, shape index: {}]
  %s12 = sld [smem:[#allocation0]]
  $region101: #{tpu_custom_call.1} parent=0
    _
  %s14 = ssub.s32 1, %s12
  %s15 = scalar_select 0, %s14, %s12
  $region1: #{tpu_custom_call.1} parent=0
    #allocation2 [shape = 'u8[8192]{0}', space=vmem, size = 0x2000, scoped, tag = 'input window, operand 0']
    #allocation3 [shape = 's32[2]{0}', space=sflag, size = 0x8, scoped, tag = 'scoped memory for tpu_custom_call.1']
    #allocation4 [shape = 's32[2]{0}', space=sflag, size = 0x8, scoped, tag = 'scoped memory for tpu_custom_call.1']
    #allocation5 [shape = 'u8[32768]{0}', space=vmem, size = 0x8000, scoped, tag = 'input window, operand 1, single buffered']
    #allocation6 [shape = 's32[1]{0}', space=sflag, size = 0x4, scoped, tag = 'scoped memory for tpu_custom_call.1']
    #allocation7 [shape = 'u8[32768]{0}', space=vmem, size = 0x8000, scoped, tag = 'input window, operand 3, single buffered']
    #allocation8 [shape = 'u8[32768]{0}', space=vmem, size = 0x8000, scoped, tag = 'input window, operand 5, single buffered']
    #allocation9 [shape = 's32[1]{0}', space=sflag, size = 0x4, scoped, tag = 'scoped memory for tpu_custom_call.1']
    #allocation10 [shape = 'u8[32768]{0}', space=vmem, size = 0x8000, scoped, tag = 'input window, operand 7, single buffered']
    #allocation11 [shape = 'u8[32768]{0}', space=vmem, size = 0x8000, scoped, tag = 'input window, operand 9, single buffered']
    #allocation12 [shape = 's32[1]{0}', space=sflag, size = 0x4, scoped, tag = 'scoped memory for tpu_custom_call.1']
    #allocation13 [shape = 'u8[16384]{0}', space=vmem, size = 0x4000, scoped, tag = 'output window, operand 0']
    %16 = vsyncpa [#allocation3], 0
    %s17 = scalar_lea.sflag [#allocation3], 1
    %18 = vsyncpa %s17, 0
    %19 = vsyncpa [#allocation6], 0
    %20 = vsyncpa [#allocation9], 0
    %21 = vsyncpa [#allocation12], 0
    %22 = vsyncpa [#allocation4], 0
    %s23 = scalar_lea.sflag [#allocation4], 1
    %24 = vsyncpa %s23, 0
    loop: start=0, step=1, limit=4
    $region2: #{tpu_custom_call.1} parent=1 // loop_pre_header
      _
    $region3: #{tpu_custom_call.1} parent=1 // loop_header
      %s26 = sphi 0, %s30
      %p27 = scmp.ge.s32.totalorder %s26, 4
      %s36 = sphi 0, %s38
      %s39 = sphi 0, %s36
      %s40 = sphi 0, %s39
      %s56 = sphi 0, %s40
      %s60 = sphi 0, %s60
      %s62 = sphi 0, %s60
      %s63 = sphi 0, %s62
      %s77 = sphi 0, %s63
      %s81 = sphi 0, %s81
      %s83 = sphi 0, %s81
      %s84 = sphi 0, %s83
      %s98 = sphi 0, %s84
      %s102 = sphi 0, %s102
      %s104 = sphi 0, %s102
      %s105 = sphi 0, %s104
      %s119 = sphi 0, %s105
      %s123 = sphi 0, %s123
      %s125 = sphi 0, %s123
      %s126 = sphi 0, %s125
      %s140 = sphi 0, %s126
      %s144 = sphi 0, %s144
      %s146 = sphi 0, %s144
      %s147 = sphi 0, %s146
      %s161 = sphi 0, %s147
      %s165 = sphi 0, %s165
      %s167 = sphi 0, %s165
      %s168 = sphi 0, %s167
      %s182 = sphi 0, %s168
      %s186 = sphi 0, %s186
      %s188 = sphi 0, %s186
      %s189 = sphi 0, %s188
      %s203 = sphi 0, %s189
      %s207 = sphi 0, %s207
      %s209 = sphi 0, %s207
      %s210 = sphi 0, %s209
      %s224 = sphi 0, %s210
      %s228 = sphi 0, %s228
      %s230 = sphi 0, %s228
      %s231 = sphi 0, %s230
      %s245 = sphi 0, %s231
      %s249 = sphi 0, %s249
      %s251 = sphi 0, %s249
      %s252 = sphi 0, %s251
      %s266 = sphi 0, %s252
      %s272 = sphi 0, %s274
      %s275 = sphi 0, %s272
      %s276 = sphi 0, %s275
      %s292 = sphi 0, %s276
    $region4: #{tpu_custom_call.1} parent=1 // loop_header_branch
      %29 = sbr.rel (%p27) target = $region8
    $region5: #{tpu_custom_call.1} parent=1 // loop_body
      %s31 = ssub.s32 %s26, 1
      %s32 = ssub.s32 %s26, 2
      %s33 = sadd.s32 %s26, 1
      %s34 = ssub.s32 %s26, %s33
      %p35 = scmp.eq.s32.totalorder %s34, 0
      %s37 = sadd.s32 %s36, 1
      %s38 = scalar_select %p35, %s36, %s37
      %p41 = pneg %p35
      %p42 = scmp.eq.s32.totalorder %s26, 1
      %p43 = por %p41, %p42
      %p44 = scmp.ne.s32.totalorder %s36, %s39
      %p45 = scmp.eq.s32.totalorder %s26, 0
      %p46 = por %p44, %p45
      %p47 = scmp.ne.s32.totalorder %s36, %s39
      %p48 = scmp.eq.s32.totalorder %s31, 1
      %p49 = por %p47, %p48
      %p50 = scmp.ne.s32.totalorder %s39, %s40
      %p51 = scmp.eq.s32.totalorder %s31, 0
      %p52 = por %p50, %p51
      %p53 = scmp.ne.s32.totalorder %s39, %s40
      %p54 = scmp.eq.s32.totalorder %s32, 1
      %p55 = por %p53, %p54
      %p57 = scmp.ne.s32.totalorder %s40, %s56
      %p58 = scmp.eq.s32.totalorder %s32, 0
      %p59 = por %p57, %p58
      %s61 = sadd.s32 %s60, 1
      %p64 = scmp.eq.s32.totalorder %s26, 1
      %p65 = scmp.ne.s32.totalorder %s60, %s62
      %p66 = scmp.eq.s32.totalorder %s26, 0
      %p67 = por %p65, %p66
      %p68 = scmp.ne.s32.totalorder %s60, %s62
      %p69 = scmp.eq.s32.totalorder %s31, 1
      %p70 = por %p68, %p69
      %p71 = scmp.ne.s32.totalorder %s62, %s63
      %p72 = scmp.eq.s32.totalorder %s31, 0
      %p73 = por %p71, %p72
      %p74 = scmp.ne.s32.totalorder %s62, %s63
      %p75 = scmp.eq.s32.totalorder %s32, 1
      %p76 = por %p74, %p75
      %p78 = scmp.ne.s32.totalorder %s63, %s77
      %p79 = scmp.eq.s32.totalorder %s32, 0
      %p80 = por %p78, %p79
      %s82 = sadd.s32 %s81, 1
      %p85 = scmp.eq.s32.totalorder %s26, 1
      %p86 = scmp.ne.s32.totalorder %s81, %s83
      %p87 = scmp.eq.s32.totalorder %s26, 0
      %p88 = por %p86, %p87
      %p89 = scmp.ne.s32.totalorder %s81, %s83
      %p90 = scmp.eq.s32.totalorder %s31, 1
      %p91 = por %p89, %p90
      %p92 = scmp.ne.s32.totalorder %s83, %s84
      %p93 = scmp.eq.s32.totalorder %s31, 0
      %p94 = por %p92, %p93
      %p95 = scmp.ne.s32.totalorder %s83, %s84
      %p96 = scmp.eq.s32.totalorder %s32, 1
      %p97 = por %p95, %p96
      %p99 = scmp.ne.s32.totalorder %s84, %s98
      %p100 = scmp.eq.s32.totalorder %s32, 0
      %p101 = por %p99, %p100
      %s103 = sadd.s32 %s102, 1
      %p106 = scmp.eq.s32.totalorder %s26, 1
      %p107 = scmp.ne.s32.totalorder %s102, %s104
      %p108 = scmp.eq.s32.totalorder %s26, 0
      %p109 = por %p107, %p108
      %p110 = scmp.ne.s32.totalorder %s102, %s104
      %p111 = scmp.eq.s32.totalorder %s31, 1
      %p112 = por %p110, %p111
      %p113 = scmp.ne.s32.totalorder %s104, %s105
      %p114 = scmp.eq.s32.totalorder %s31, 0
      %p115 = por %p113, %p114
      %p116 = scmp.ne.s32.totalorder %s104, %s105
      %p117 = scmp.eq.s32.totalorder %s32, 1
      %p118 = por %p116, %p117
      %p120 = scmp.ne.s32.totalorder %s105, %s119
      %p121 = scmp.eq.s32.totalorder %s32, 0
      %p122 = por %p120, %p121
      %s124 = sadd.s32 %s123, 1
      %p127 = scmp.eq.s32.totalorder %s26, 1
      %p128 = scmp.ne.s32.totalorder %s123, %s125
      %p129 = scmp.eq.s32.totalorder %s26, 0
      %p130 = por %p128, %p129
      %p131 = scmp.ne.s32.totalorder %s123, %s125
      %p132 = scmp.eq.s32.totalorder %s31, 1
      %p133 = por %p131, %p132
      %p134 = scmp.ne.s32.totalorder %s125, %s126
      %p135 = scmp.eq.s32.totalorder %s31, 0
      %p136 = por %p134, %p135
      %p137 = scmp.ne.s32.totalorder %s125, %s126
      %p138 = scmp.eq.s32.totalorder %s32, 1
      %p139 = por %p137, %p138
      %p141 = scmp.ne.s32.totalorder %s126, %s140
      %p142 = scmp.eq.s32.totalorder %s32, 0
      %p143 = por %p141, %p142
      %s145 = sadd.s32 %s144, 1
      %p148 = scmp.eq.s32.totalorder %s26, 1
      %p149 = scmp.ne.s32.totalorder %s144, %s146
      %p150 = scmp.eq.s32.totalorder %s26, 0
      %p151 = por %p149, %p150
      %p152 = scmp.ne.s32.totalorder %s144, %s146
      %p153 = scmp.eq.s32.totalorder %s31, 1
      %p154 = por %p152, %p153
      %p155 = scmp.ne.s32.totalorder %s146, %s147
      %p156 = scmp.eq.s32.totalorder %s31, 0
      %p157 = por %p155, %p156
      %p158 = scmp.ne.s32.totalorder %s146, %s147
      %p159 = scmp.eq.s32.totalorder %s32, 1
      %p160 = por %p158, %p159
      %p162 = scmp.ne.s32.totalorder %s147, %s161
      %p163 = scmp.eq.s32.totalorder %s32, 0
      %p164 = por %p162, %p163
      %s166 = sadd.s32 %s165, 1
      %p169 = scmp.eq.s32.totalorder %s26, 1
      %p170 = scmp.ne.s32.totalorder %s165, %s167
      %p171 = scmp.eq.s32.totalorder %s26, 0
      %p172 = por %p170, %p171
      %p173 = scmp.ne.s32.totalorder %s165, %s167
      %p174 = scmp.eq.s32.totalorder %s31, 1
      %p175 = por %p173, %p174
      %p176 = scmp.ne.s32.totalorder %s167, %s168
      %p177 = scmp.eq.s32.totalorder %s31, 0
      %p178 = por %p176, %p177
      %p179 = scmp.ne.s32.totalorder %s167, %s168
      %p180 = scmp.eq.s32.totalorder %s32, 1
      %p181 = por %p179, %p180
      %p183 = scmp.ne.s32.totalorder %s168, %s182
      %p184 = scmp.eq.s32.totalorder %s32, 0
      %p185 = por %p183, %p184
      %s187 = sadd.s32 %s186, 1
      %p190 = scmp.eq.s32.totalorder %s26, 1
      %p191 = scmp.ne.s32.totalorder %s186, %s188
      %p192 = scmp.eq.s32.totalorder %s26, 0
      %p193 = por %p191, %p192
      %p194 = scmp.ne.s32.totalorder %s186, %s188
      %p195 = scmp.eq.s32.totalorder %s31, 1
      %p196 = por %p194, %p195
      %p197 = scmp.ne.s32.totalorder %s188, %s189
      %p198 = scmp.eq.s32.totalorder %s31, 0
      %p199 = por %p197, %p198
      %p200 = scmp.ne.s32.totalorder %s188, %s189
      %p201 = scmp.eq.s32.totalorder %s32, 1
      %p202 = por %p200, %p201
      %p204 = scmp.ne.s32.totalorder %s189, %s203
      %p205 = scmp.eq.s32.totalorder %s32, 0
      %p206 = por %p204, %p205
      %s208 = sadd.s32 %s207, 1
      %p211 = scmp.eq.s32.totalorder %s26, 1
      %p212 = scmp.ne.s32.totalorder %s207, %s209
      %p213 = scmp.eq.s32.totalorder %s26, 0
      %p214 = por %p212, %p213
      %p215 = scmp.ne.s32.totalorder %s207, %s209
      %p216 = scmp.eq.s32.totalorder %s31, 1
      %p217 = por %p215, %p216
      %p218 = scmp.ne.s32.totalorder %s209, %s210
      %p219 = scmp.eq.s32.totalorder %s31, 0
      %p220 = por %p218, %p219
      %p221 = scmp.ne.s32.totalorder %s209, %s210
      %p222 = scmp.eq.s32.totalorder %s32, 1
      %p223 = por %p221, %p222
      %p225 = scmp.ne.s32.totalorder %s210, %s224
      %p226 = scmp.eq.s32.totalorder %s32, 0
      %p227 = por %p225, %p226
      %s229 = sadd.s32 %s228, 1
      %p232 = scmp.eq.s32.totalorder %s26, 1
      %p233 = scmp.ne.s32.totalorder %s228, %s230
      %p234 = scmp.eq.s32.totalorder %s26, 0
      %p235 = por %p233, %p234
      %p236 = scmp.ne.s32.totalorder %s228, %s230
      %p237 = scmp.eq.s32.totalorder %s31, 1
      %p238 = por %p236, %p237
      %p239 = scmp.ne.s32.totalorder %s230, %s231
      %p240 = scmp.eq.s32.totalorder %s31, 0
      %p241 = por %p239, %p240
      %p242 = scmp.ne.s32.totalorder %s230, %s231
      %p243 = scmp.eq.s32.totalorder %s32, 1
      %p244 = por %p242, %p243
      %p246 = scmp.ne.s32.totalorder %s231, %s245
      %p247 = scmp.eq.s32.totalorder %s32, 0
      %p248 = por %p246, %p247
      %s250 = sadd.s32 %s249, 1
      %p253 = scmp.eq.s32.totalorder %s26, 1
      %p254 = scmp.ne.s32.totalorder %s249, %s251
      %p255 = scmp.eq.s32.totalorder %s26, 0
      %p256 = por %p254, %p255
      %p257 = scmp.ne.s32.totalorder %s249, %s251
      %p258 = scmp.eq.s32.totalorder %s31, 1
      %p259 = por %p257, %p258
      %p260 = scmp.ne.s32.totalorder %s251, %s252
      %p261 = scmp.eq.s32.totalorder %s31, 0
      %p262 = por %p260, %p261
      %p263 = scmp.ne.s32.totalorder %s251, %s252
      %p264 = scmp.eq.s32.totalorder %s32, 1
      %p265 = por %p263, %p264
      %p267 = scmp.ne.s32.totalorder %s252, %s266
      %p268 = scmp.eq.s32.totalorder %s32, 0
      %p269 = por %p267, %p268
      %s270 = ssub.s32 %s26, %s33
      %p271 = scmp.eq.s32.totalorder %s270, 0
      %s273 = sadd.s32 %s272, 1
      %s274 = scalar_select %p271, %s272, %s273
      %p277 = pneg %p271
      %p278 = scmp.eq.s32.totalorder %s26, 1
      %p279 = por %p277, %p278
      %p280 = scmp.ne.s32.totalorder %s272, %s275
      %p281 = scmp.eq.s32.totalorder %s26, 0
      %p282 = por %p280, %p281
      %p283 = scmp.ne.s32.totalorder %s272, %s275
      %p284 = scmp.eq.s32.totalorder %s31, 1
      %p285 = por %p283, %p284
      %p286 = scmp.ne.s32.totalorder %s275, %s276
      %p287 = scmp.eq.s32.totalorder %s31, 0
      %p288 = por %p286, %p287
      %p289 = scmp.ne.s32.totalorder %s275, %s276
      %p290 = scmp.eq.s32.totalorder %s32, 1
      %p291 = por %p289, %p290
      %p293 = scmp.ne.s32.totalorder %s276, %s292
      %p294 = scmp.eq.s32.totalorder %s32, 0
      %p295 = por %p293, %p294
      %p296 = scmp.le.s32.totalorder 1, %s26
      %p297 = scmp.lt.s32.totalorder %s26, 3
      %p298 = pnand %p296, %p297
      %p299 = pneg %p298
      // Predicated region
      $region9: #{tpu_custom_call.1} parent=5 // pred_check
        _
      $region10: #{tpu_custom_call.1} parent=5 // pred_check_branch
        %301 = sbr.rel (%p298) target = $region12
      $region11: #{tpu_custom_call.1} parent=5 // pred_region
        %s302 = ssub.s32 %s26, 1
        // Predicated region
        $region13: #{tpu_custom_call.1} parent=11 // pred_check
          %p303 = pneg %p73
        $region14: #{tpu_custom_call.1} parent=11 // pred_check_branch
          %305 = sbr.rel (%p303) target = $region16
        $region15: #{tpu_custom_call.1} parent=11 // pred_region
          %307 = vsyncadd [#allocation6], 0
          %s308 = sshll.u32 %s1, 4
          %s309 = int_to_ptr.hbm [resolvable:$true] %s308
          %s310 = sshll.u32 [#allocation5], 4
          %s311 = int_to_ptr.vmem [resolvable:$true] %s310
          %316 = dma.hbm_to_vmem [thread:$0]  %s309, 1024, %s311, [#allocation6], 64, 64, 4
        $region16: #{tpu_custom_call.1} parent=11 // pred_fallthru
          _
        // Predicated region
        $region17: #{tpu_custom_call.1} parent=11 // pred_check
          %p317 = pneg %p94
        $region18: #{tpu_custom_call.1} parent=11 // pred_check_branch
          %319 = sbr.rel (%p317) target = $region20
        $region19: #{tpu_custom_call.1} parent=11 // pred_region
          _
        $region20: #{tpu_custom_call.1} parent=11 // pred_fallthru
          _
        // Predicated region
        $region21: #{tpu_custom_call.1} parent=11 // pred_check
          %p320 = pneg %p115
        $region22: #{tpu_custom_call.1} parent=11 // pred_check_branch
          %322 = sbr.rel (%p320) target = $region24
        $region23: #{tpu_custom_call.1} parent=11 // pred_region
          %324 = vsyncadd [#allocation6], 0
          %s325 = sshll.u32 %s3, 4
          %s326 = int_to_ptr.hbm [resolvable:$true] %s325
          %s327 = sshll.u32 [#allocation7], 4
          %s328 = int_to_ptr.vmem [resolvable:$true] %s327
          %333 = dma.hbm_to_vmem [thread:$0]  %s326, 1024, %s328, [#allocation6], 64, 64, 4
        $region24: #{tpu_custom_call.1} parent=11 // pred_fallthru
          _
        // Predicated region
        $region25: #{tpu_custom_call.1} parent=11 // pred_check
          %p334 = pneg %p136
        $region26: #{tpu_custom_call.1} parent=11 // pred_check_branch
          %336 = sbr.rel (%p334) target = $region28
        $region27: #{tpu_custom_call.1} parent=11 // pred_region
          _
        $region28: #{tpu_custom_call.1} parent=11 // pred_fallthru
          _
        // Predicated region
        $region29: #{tpu_custom_call.1} parent=11 // pred_check
          %p337 = pneg %p157
        $region30: #{tpu_custom_call.1} parent=11 // pred_check_branch
          %339 = sbr.rel (%p337) target = $region32
        $region31: #{tpu_custom_call.1} parent=11 // pred_region
          %341 = vsyncadd [#allocation9], 0
          %s342 = sshll.u32 %s5, 4
          %s343 = int_to_ptr.hbm [resolvable:$true] %s342
          %s344 = sshll.u32 [#allocation8], 4
          %s345 = int_to_ptr.vmem [resolvable:$true] %s344
          %350 = dma.hbm_to_vmem [thread:$0]  %s343, 1024, %s345, [#allocation9], 64, 64, 4
        $region32: #{tpu_custom_call.1} parent=11 // pred_fallthru
          _
        // Predicated region
        $region33: #{tpu_custom_call.1} parent=11 // pred_check
          %p351 = pneg %p178
        $region34: #{tpu_custom_call.1} parent=11 // pred_check_branch
          %353 = sbr.rel (%p351) target = $region36
        $region35: #{tpu_custom_call.1} parent=11 // pred_region
          _
        $region36: #{tpu_custom_call.1} parent=11 // pred_fallthru
          _
        // Predicated region
        $region37: #{tpu_custom_call.1} parent=11 // pred_check
          %p354 = pneg %p199
        $region38: #{tpu_custom_call.1} parent=11 // pred_check_branch
          %356 = sbr.rel (%p354) target = $region40
        $region39: #{tpu_custom_call.1} parent=11 // pred_region
          %358 = vsyncadd [#allocation9], 0
          %s359 = sshll.u32 %s7, 4
          %s360 = int_to_ptr.hbm [resolvable:$true] %s359
          %s361 = sshll.u32 [#allocation10], 4
          %s362 = int_to_ptr.vmem [resolvable:$true] %s361
          %367 = dma.hbm_to_vmem [thread:$0]  %s360, 1024, %s362, [#allocation9], 64, 64, 4
        $region40: #{tpu_custom_call.1} parent=11 // pred_fallthru
          _
        // Predicated region
        $region41: #{tpu_custom_call.1} parent=11 // pred_check
          %p368 = pneg %p220
        $region42: #{tpu_custom_call.1} parent=11 // pred_check_branch
          %370 = sbr.rel (%p368) target = $region44
        $region43: #{tpu_custom_call.1} parent=11 // pred_region
          _
        $region44: #{tpu_custom_call.1} parent=11 // pred_fallthru
          _
        // Predicated region
        $region45: #{tpu_custom_call.1} parent=11 // pred_check
          %p371 = pneg %p241
        $region46: #{tpu_custom_call.1} parent=11 // pred_check_branch
          %373 = sbr.rel (%p371) target = $region48
        $region47: #{tpu_custom_call.1} parent=11 // pred_region
          %375 = vsyncadd [#allocation12], 0
          %s376 = sshll.u32 %s9, 4
          %s377 = int_to_ptr.hbm [resolvable:$true] %s376
          %s378 = sshll.u32 [#allocation11], 4
          %s379 = int_to_ptr.vmem [resolvable:$true] %s378
          %384 = dma.hbm_to_vmem [thread:$0]  %s377, 1024, %s379, [#allocation12], 64, 64, 4
        $region48: #{tpu_custom_call.1} parent=11 // pred_fallthru
          _
        // Predicated region
        $region49: #{tpu_custom_call.1} parent=11 // pred_check
          %p385 = pneg %p262
        $region50: #{tpu_custom_call.1} parent=11 // pred_check_branch
          %387 = sbr.rel (%p385) target = $region52
        $region51: #{tpu_custom_call.1} parent=11 // pred_region
          _
        $region52: #{tpu_custom_call.1} parent=11 // pred_fallthru
          _
      $region12: #{tpu_custom_call.1} parent=5 // pred_fallthru
        _
      %p388 = scmp.lt.s32.totalorder %s26, 2
      // Predicated region
      $region53: #{tpu_custom_call.1} parent=5 // pred_check
        %p389 = pneg %p388
      $region54: #{tpu_custom_call.1} parent=5 // pred_check_branch
        %391 = sbr.rel (%p389) target = $region56
      $region55: #{tpu_custom_call.1} parent=5 // pred_region
        // Predicated region
        $region57: #{tpu_custom_call.1} parent=55 // pred_check
          %p392 = pneg %p46
        $region58: #{tpu_custom_call.1} parent=55 // pred_check_branch
          %394 = sbr.rel (%p392) target = $region60
        $region59: #{tpu_custom_call.1} parent=55 // pred_region
          %s395 = sand.u32 %s36, 1
          %s396 = scalar_lea.sflag [#allocation3], %s395
          %s397 = sand.u32 %s36, 1
          %s398 = smul.addr %s397, 8
          %s399 = scalar_lea.vmem [#allocation2], %s398
          %s400 = smul.u32 2, %s26
          %402 = vsyncadd %s396, 0
          %s403 = smul.addr %s400, 4
          %s404 = scalar_lea.hbm %s0, %s403
          %s405 = sshll.u32 %s404, 4
          %s406 = int_to_ptr.hbm [resolvable:$true] %s405
          %s407 = sshll.u32 %s399, 4
          %s408 = int_to_ptr.vmem [resolvable:$true] %s407
          %413 = dma.hbm_to_vmem [thread:$0]  %s406, 128, %s408, %s396, 64, 64, 4
        $region60: #{tpu_custom_call.1} parent=55 // pred_fallthru
          _
      $region56: #{tpu_custom_call.1} parent=5 // pred_fallthru
        _
      %p414 = scmp.le.s32.totalorder 1, %s26
      %p415 = scmp.lt.s32.totalorder %s26, 3
      %p416 = pnand %p414, %p415
      %p417 = pneg %p416
      // Predicated region
      $region61: #{tpu_custom_call.1} parent=5 // pred_check
        _
      $region62: #{tpu_custom_call.1} parent=5 // pred_check_branch
        %419 = sbr.rel (%p416) target = $region64
      $region63: #{tpu_custom_call.1} parent=5 // pred_region
        %s420 = ssub.s32 %s26, 1
        %s421 = sand.u32 %s39, 1
        %s422 = scalar_lea.sflag [#allocation3], %s421
        %s423 = sand.u32 %s39, 1
        %s424 = smul.addr %s423, 8
        %s425 = scalar_lea.vmem [#allocation2], %s424
        // Predicated region
        $region65: #{tpu_custom_call.1} parent=63 // pred_check
          %p426 = pneg %p52
        $region66: #{tpu_custom_call.1} parent=63 // pred_check_branch
          %428 = sbr.rel (%p426) target = $region68
        $region67: #{tpu_custom_call.1} parent=63 // pred_region
          %430 = dma.done %s422, 128
        $region68: #{tpu_custom_call.1} parent=63 // pred_fallthru
          _
        // Predicated region
        $region69: #{tpu_custom_call.1} parent=63 // pred_check
          %p431 = pneg %p73
        $region70: #{tpu_custom_call.1} parent=63 // pred_check_branch
          %433 = sbr.rel (%p431) target = $region72
        $region71: #{tpu_custom_call.1} parent=63 // pred_region
          %435 = dma.done [#allocation6], 1024
        $region72: #{tpu_custom_call.1} parent=63 // pred_fallthru
          _
        // Predicated region
        $region73: #{tpu_custom_call.1} parent=63 // pred_check
          %p436 = pneg %p115
        $region74: #{tpu_custom_call.1} parent=63 // pred_check_branch
          %438 = sbr.rel (%p436) target = $region76
        $region75: #{tpu_custom_call.1} parent=63 // pred_region
          %440 = dma.done [#allocation6], 1024
        $region76: #{tpu_custom_call.1} parent=63 // pred_fallthru
          _
        // Predicated region
        $region77: #{tpu_custom_call.1} parent=63 // pred_check
          %p441 = pneg %p157
        $region78: #{tpu_custom_call.1} parent=63 // pred_check_branch
          %443 = sbr.rel (%p441) target = $region80
        $region79: #{tpu_custom_call.1} parent=63 // pred_region
          %445 = dma.done [#allocation9], 1024
        $region80: #{tpu_custom_call.1} parent=63 // pred_fallthru
          _
        // Predicated region
        $region81: #{tpu_custom_call.1} parent=63 // pred_check
          %p446 = pneg %p199
        $region82: #{tpu_custom_call.1} parent=63 // pred_check_branch
          %448 = sbr.rel (%p446) target = $region84
        $region83: #{tpu_custom_call.1} parent=63 // pred_region
          %450 = dma.done [#allocation9], 1024
        $region84: #{tpu_custom_call.1} parent=63 // pred_fallthru
          _
        // Predicated region
        $region85: #{tpu_custom_call.1} parent=63 // pred_check
          %p451 = pneg %p241
        $region86: #{tpu_custom_call.1} parent=63 // pred_check_branch
          %453 = sbr.rel (%p451) target = $region88
        $region87: #{tpu_custom_call.1} parent=63 // pred_region
          %455 = dma.done [#allocation12], 1024
        $region88: #{tpu_custom_call.1} parent=63 // pred_fallthru
          _
        %s456 = sand.u32 %s39, 1
        %s457 = scalar_lea.sflag [#allocation3], %s456
        %s458 = sand.u32 %s39, 1
        %s459 = smul.addr %s458, 8
        %s460 = scalar_lea.vmem [#allocation2], %s459
        %p461 = pneg %p52
        %p462 = pneg %p49
        %p463 = pneg %p73
        %p464 = pneg %p70
        %p465 = pneg %p94
        %p466 = pneg %p91
        %p467 = pneg %p115
        %p468 = pneg %p112
        %p469 = pneg %p136
        %p470 = pneg %p133
        %p471 = pneg %p157
        %p472 = pneg %p154
        %p473 = pneg %p178
        %p474 = pneg %p175
        %p475 = pneg %p199
        %p476 = pneg %p196
        %p477 = pneg %p220
        %p478 = pneg %p217
        %p479 = pneg %p241
        %p480 = pneg %p238
        %p481 = pneg %p262
        %p482 = pneg %p259
        %p483 = pneg %p288
        %p484 = pneg %p285
        %s485 = sand.u32 %s275, 1
        %s486 = scalar_lea.sflag [#allocation4], %s485
        %s487 = sand.u32 %s275, 1
        %s488 = smul.addr %s487, 16
        %s489 = scalar_lea.vmem [#allocation13], %s488
        %s490 = smul.u32 2, %s31
        %s491 = smul.u32 2, %s31
        %v492 = vld [vmem:[%s425] sm:$0xf]
        %v493 = vld [vmem:[%s425 + $0x4] sm:$0xf]
        %v494 = vld [vmem:[#allocation5] sm:$0xf]
        %v495 = vld [vmem:[#allocation5 + $0x4] sm:$0xf]
        %v496 = vld [vmem:[#allocation5 + $0x8] sm:$0xf]
        %v497 = vld [vmem:[#allocation5 + $0xc] sm:$0xf]
        %v498 = vld [vmem:[#allocation5 + $0x10] sm:$0xf]
        %v499 = vld [vmem:[#allocation5 + $0x14] sm:$0xf]
        %v500 = vld [vmem:[#allocation5 + $0x18] sm:$0xf]
        %v501 = vld [vmem:[#allocation5 + $0x1c] sm:$0xf]
        %v502 = vld [vmem:[#allocation5 + $0x20] sm:$0xf]
        %v503 = vld [vmem:[#allocation5 + $0x24] sm:$0xf]
        %v504 = vld [vmem:[#allocation5 + $0x28] sm:$0xf]
        %v505 = vld [vmem:[#allocation5 + $0x2c] sm:$0xf]
        %v506 = vld [vmem:[#allocation5 + $0x30] sm:$0xf]
        %v507 = vld [vmem:[#allocation5 + $0x34] sm:$0xf]
        %v508 = vld [vmem:[#allocation5 + $0x38] sm:$0xf]
        %v509 = vld [vmem:[#allocation5 + $0x3c] sm:$0xf]
        %v510 = vld [vmem:[%s2] sm:$0x1]
        %v512 = vperm.slane %v510, 0
        %v516 = vunpack.c.l.b16 %v492
        %v517 = vunpack.c.l.b16 %v493
        %v518 = vpack.c.b16 %v517, %v516
        %v536 = vunpack.c.l.b16 %v494
        %v537 = vunpack.c.l.b16 %v495
        %v538 = vunpack.c.l.b16 %v496
        %v539 = vunpack.c.l.b16 %v497
        %v540 = vunpack.c.l.b16 %v498
        %v541 = vunpack.c.l.b16 %v499
        %v542 = vunpack.c.l.b16 %v500
        %v543 = vunpack.c.l.b16 %v501
        %v544 = vunpack.c.l.b16 %v502
        %v545 = vunpack.c.l.b16 %v503
        %v546 = vunpack.c.l.b16 %v504
        %v547 = vunpack.c.l.b16 %v505
        %v548 = vunpack.c.l.b16 %v506
        %v549 = vunpack.c.l.b16 %v507
        %v550 = vunpack.c.l.b16 %v508
        %v551 = vunpack.c.l.b16 %v509
        %v552 = vpack.c.b16 %v537, %v536
        %v553 = vpack.c.b16 %v539, %v538
        %v554 = vpack.c.b16 %v541, %v540
        %v555 = vpack.c.b16 %v543, %v542
        %v556 = vpack.c.b16 %v545, %v544
        %v557 = vpack.c.b16 %v547, %v546
        %v558 = vpack.c.b16 %v549, %v548
        %v559 = vpack.c.b16 %v551, %v550
        %568 = vmatpush.bf16.msra.mxu0 %v559
        %569 = vmatpush.bf16.msra.mxu0 %v558
        %570 = vmatpush.bf16.msra.mxu0 %v557
        %571 = vmatpush.bf16.msra.mxu0 %v556
        %572 = vmatpush.bf16.msra.mxu0 %v555
        %573 = vmatpush.bf16.msra.mxu0 %v554
        %574 = vmatpush.bf16.msra.mxu0 %v553
        %575 = vmatpush.bf16.msra.mxu0 %v552
        %576 = vmatmul.bf16.gmra.mxu0 %v518
        %v577 = vpop.f32.mrf.mxu0
        %v578 = vadd.f32 %v512, %v577
        %v579 = vpop.f32.mrf.mxu0
        %v580 = vadd.f32 %v512, %v579
        %581 = vdwg.mxu0
        %v582 = vmax.f32 %v578, 0.0
        %v583 = vmax.f32 %v580, 0.0
        %v584 = vpack.c.bf16 %v583, %v582
        %v585 = vld [vmem:[#allocation7] sm:$0xf]
        %v586 = vld [vmem:[#allocation7 + $0x4] sm:$0xf]
        %v587 = vld [vmem:[#allocation7 + $0x8] sm:$0xf]
        %v588 = vld [vmem:[#allocation7 + $0xc] sm:$0xf]
        %v589 = vld [vmem:[#allocation7 + $0x10] sm:$0xf]
        %v590 = vld [vmem:[#allocation7 + $0x14] sm:$0xf]
        %v591 = vld [vmem:[#allocation7 + $0x18] sm:$0xf]
        %v592 = vld [vmem:[#allocation7 + $0x1c] sm:$0xf]
        %v593 = vld [vmem:[#allocation7 + $0x20] sm:$0xf]
        %v594 = vld [vmem:[#allocation7 + $0x24] sm:$0xf]
        %v595 = vld [vmem:[#allocation7 + $0x28] sm:$0xf]
        %v596 = vld [vmem:[#allocation7 + $0x2c] sm:$0xf]
        %v597 = vld [vmem:[#allocation7 + $0x30] sm:$0xf]
        %v598 = vld [vmem:[#allocation7 + $0x34] sm:$0xf]
        %v599 = vld [vmem:[#allocation7 + $0x38] sm:$0xf]
        %v600 = vld [vmem:[#allocation7 + $0x3c] sm:$0xf]
        %v601 = vld [vmem:[%s4] sm:$0x1]
        %v603 = vperm.slane %v601, 0
        %v621 = vunpack.c.l.b16 %v585
        %v622 = vunpack.c.l.b16 %v586
        %v623 = vunpack.c.l.b16 %v587
        %v624 = vunpack.c.l.b16 %v588
        %v625 = vunpack.c.l.b16 %v589
        %v626 = vunpack.c.l.b16 %v590
        %v627 = vunpack.c.l.b16 %v591
        %v628 = vunpack.c.l.b16 %v592
        %v629 = vunpack.c.l.b16 %v593
        %v630 = vunpack.c.l.b16 %v594
        %v631 = vunpack.c.l.b16 %v595
        %v632 = vunpack.c.l.b16 %v596
        %v633 = vunpack.c.l.b16 %v597
        %v634 = vunpack.c.l.b16 %v598
        %v635 = vunpack.c.l.b16 %v599
        %v636 = vunpack.c.l.b16 %v600
        %v637 = vpack.c.b16 %v622, %v621
        %v638 = vpack.c.b16 %v624, %v623
        %v639 = vpack.c.b16 %v626, %v625
        %v640 = vpack.c.b16 %v628, %v627
        %v641 = vpack.c.b16 %v630, %v629
        %v642 = vpack.c.b16 %v632, %v631
        %v643 = vpack.c.b16 %v634, %v633
        %v644 = vpack.c.b16 %v636, %v635
        %653 = vmatpush.bf16.msra.mxu0 %v644
        %654 = vmatpush.bf16.msra.mxu0 %v643
        %655 = vmatpush.bf16.msra.mxu0 %v642
        %656 = vmatpush.bf16.msra.mxu0 %v641
        %657 = vmatpush.bf16.msra.mxu0 %v640
        %658 = vmatpush.bf16.msra.mxu0 %v639
        %659 = vmatpush.bf16.msra.mxu0 %v638
        %660 = vmatpush.bf16.msra.mxu0 %v637
        %661 = vmatmul.bf16.gmra.mxu0 %v584
        %v662 = vpop.f32.mrf.mxu0
        %v663 = vadd.f32 %v603, %v662
        %v664 = vpop.f32.mrf.mxu0
        %v665 = vadd.f32 %v603, %v664
        %666 = vdwg.mxu0
        %v667 = vmax.f32 %v663, 0.0
        %v668 = vmax.f32 %v665, 0.0
        %v669 = vpack.c.bf16 %v668, %v667
        %v670 = vld [vmem:[#allocation8] sm:$0xf]
        %v671 = vld [vmem:[#allocation8 + $0x4] sm:$0xf]
        %v672 = vld [vmem:[#allocation8 + $0x8] sm:$0xf]
        %v673 = vld [vmem:[#allocation8 + $0xc] sm:$0xf]
        %v674 = vld [vmem:[#allocation8 + $0x10] sm:$0xf]
        %v675 = vld [vmem:[#allocation8 + $0x14] sm:$0xf]
        %v676 = vld [vmem:[#allocation8 + $0x18] sm:$0xf]
        %v677 = vld [vmem:[#allocation8 + $0x1c] sm:$0xf]
        %v678 = vld [vmem:[#allocation8 + $0x20] sm:$0xf]
        %v679 = vld [vmem:[#allocation8 + $0x24] sm:$0xf]
        %v680 = vld [vmem:[#allocation8 + $0x28] sm:$0xf]
        %v681 = vld [vmem:[#allocation8 + $0x2c] sm:$0xf]
        %v682 = vld [vmem:[#allocation8 + $0x30] sm:$0xf]
        %v683 = vld [vmem:[#allocation8 + $0x34] sm:$0xf]
        %v684 = vld [vmem:[#allocation8 + $0x38] sm:$0xf]
        %v685 = vld [vmem:[#allocation8 + $0x3c] sm:$0xf]
        %v686 = vld [vmem:[%s6] sm:$0x1]
        %v688 = vperm.slane %v686, 0
        %v706 = vunpack.c.l.b16 %v670
        %v707 = vunpack.c.l.b16 %v671
        %v708 = vunpack.c.l.b16 %v672
        %v709 = vunpack.c.l.b16 %v673
        %v710 = vunpack.c.l.b16 %v674
        %v711 = vunpack.c.l.b16 %v675
        %v712 = vunpack.c.l.b16 %v676
        %v713 = vunpack.c.l.b16 %v677
        %v714 = vunpack.c.l.b16 %v678
        %v715 = vunpack.c.l.b16 %v679
        %v716 = vunpack.c.l.b16 %v680
        %v717 = vunpack.c.l.b16 %v681
        %v718 = vunpack.c.l.b16 %v682
        %v719 = vunpack.c.l.b16 %v683
        %v720 = vunpack.c.l.b16 %v684
        %v721 = vunpack.c.l.b16 %v685
        %v722 = vpack.c.b16 %v707, %v706
        %v723 = vpack.c.b16 %v709, %v708
        %v724 = vpack.c.b16 %v711, %v710
        %v725 = vpack.c.b16 %v713, %v712
        %v726 = vpack.c.b16 %v715, %v714
        %v727 = vpack.c.b16 %v717, %v716
        %v728 = vpack.c.b16 %v719, %v718
        %v729 = vpack.c.b16 %v721, %v720
        %738 = vmatpush.bf16.msra.mxu0 %v729
        %739 = vmatpush.bf16.msra.mxu0 %v728
        %740 = vmatpush.bf16.msra.mxu0 %v727
        %741 = vmatpush.bf16.msra.mxu0 %v726
        %742 = vmatpush.bf16.msra.mxu0 %v725
        %743 = vmatpush.bf16.msra.mxu0 %v724
        %744 = vmatpush.bf16.msra.mxu0 %v723
        %745 = vmatpush.bf16.msra.mxu0 %v722
        %746 = vmatmul.bf16.gmra.mxu0 %v669
        %v747 = vpop.f32.mrf.mxu0
        %v748 = vadd.f32 %v688, %v747
        %v749 = vpop.f32.mrf.mxu0
        %v750 = vadd.f32 %v688, %v749
        %751 = vdwg.mxu0
        %v752 = vmax.f32 %v748, 0.0
        %v753 = vmax.f32 %v750, 0.0
        %v754 = vpack.c.bf16 %v753, %v752
        %v755 = vld [vmem:[#allocation10] sm:$0xf]
        %v756 = vld [vmem:[#allocation10 + $0x4] sm:$0xf]
        %v757 = vld [vmem:[#allocation10 + $0x8] sm:$0xf]
        %v758 = vld [vmem:[#allocation10 + $0xc] sm:$0xf]
        %v759 = vld [vmem:[#allocation10 + $0x10] sm:$0xf]
        %v760 = vld [vmem:[#allocation10 + $0x14] sm:$0xf]
        %v761 = vld [vmem:[#allocation10 + $0x18] sm:$0xf]
        %v762 = vld [vmem:[#allocation10 + $0x1c] sm:$0xf]
        %v763 = vld [vmem:[#allocation10 + $0x20] sm:$0xf]
        %v764 = vld [vmem:[#allocation10 + $0x24] sm:$0xf]
        %v765 = vld [vmem:[#allocation10 + $0x28] sm:$0xf]
        %v766 = vld [vmem:[#allocation10 + $0x2c] sm:$0xf]
        %v767 = vld [vmem:[#allocation10 + $0x30] sm:$0xf]
        %v768 = vld [vmem:[#allocation10 + $0x34] sm:$0xf]
        %v769 = vld [vmem:[#allocation10 + $0x38] sm:$0xf]
        %v770 = vld [vmem:[#allocation10 + $0x3c] sm:$0xf]
        %v771 = vld [vmem:[%s8] sm:$0x1]
        %v773 = vperm.slane %v771, 0
        %v791 = vunpack.c.l.b16 %v755
        %v792 = vunpack.c.l.b16 %v756
        %v793 = vunpack.c.l.b16 %v757
        %v794 = vunpack.c.l.b16 %v758
        %v795 = vunpack.c.l.b16 %v759
        %v796 = vunpack.c.l.b16 %v760
        %v797 = vunpack.c.l.b16 %v761
        %v798 = vunpack.c.l.b16 %v762
        %v799 = vunpack.c.l.b16 %v763
        %v800 = vunpack.c.l.b16 %v764
        %v801 = vunpack.c.l.b16 %v765
        %v802 = vunpack.c.l.b16 %v766
        %v803 = vunpack.c.l.b16 %v767
        %v804 = vunpack.c.l.b16 %v768
        %v805 = vunpack.c.l.b16 %v769
        %v806 = vunpack.c.l.b16 %v770
        %v807 = vpack.c.b16 %v792, %v791
        %v808 = vpack.c.b16 %v794, %v793
        %v809 = vpack.c.b16 %v796, %v795
        %v810 = vpack.c.b16 %v798, %v797
        %v811 = vpack.c.b16 %v800, %v799
        %v812 = vpack.c.b16 %v802, %v801
        %v813 = vpack.c.b16 %v804, %v803
        %v814 = vpack.c.b16 %v806, %v805
        %823 = vmatpush.bf16.msra.mxu0 %v814
        %824 = vmatpush.bf16.msra.mxu0 %v813
        %825 = vmatpush.bf16.msra.mxu0 %v812
        %826 = vmatpush.bf16.msra.mxu0 %v811
        %827 = vmatpush.bf16.msra.mxu0 %v810
        %828 = vmatpush.bf16.msra.mxu0 %v809
        %829 = vmatpush.bf16.msra.mxu0 %v808
        %830 = vmatpush.bf16.msra.mxu0 %v807
        %831 = vmatmul.bf16.gmra.mxu0 %v754
        %v832 = vpop.f32.mrf.mxu0
        %v833 = vadd.f32 %v773, %v832
        %v834 = vpop.f32.mrf.mxu0
        %v835 = vadd.f32 %v773, %v834
        %836 = vdwg.mxu0
        %v837 = vmax.f32 %v833, 0.0
        %v838 = vmax.f32 %v835, 0.0
        %v839 = vpack.c.bf16 %v838, %v837
        %v840 = vld [vmem:[#allocation11] sm:$0xf]
        %v841 = vld [vmem:[#allocation11 + $0x4] sm:$0xf]
        %v842 = vld [vmem:[#allocation11 + $0x8] sm:$0xf]
        %v843 = vld [vmem:[#allocation11 + $0xc] sm:$0xf]
        %v844 = vld [vmem:[#allocation11 + $0x10] sm:$0xf]
        %v845 = vld [vmem:[#allocation11 + $0x14] sm:$0xf]
        %v846 = vld [vmem:[#allocation11 + $0x18] sm:$0xf]
        %v847 = vld [vmem:[#allocation11 + $0x1c] sm:$0xf]
        %v848 = vld [vmem:[#allocation11 + $0x20] sm:$0xf]
        %v849 = vld [vmem:[#allocation11 + $0x24] sm:$0xf]
        %v850 = vld [vmem:[#allocation11 + $0x28] sm:$0xf]
        %v851 = vld [vmem:[#allocation11 + $0x2c] sm:$0xf]
        %v852 = vld [vmem:[#allocation11 + $0x30] sm:$0xf]
        %v853 = vld [vmem:[#allocation11 + $0x34] sm:$0xf]
        %v854 = vld [vmem:[#allocation11 + $0x38] sm:$0xf]
        %v855 = vld [vmem:[#allocation11 + $0x3c] sm:$0xf]
        %v856 = vld [vmem:[%s10] sm:$0x1]
        %v858 = vperm.slane %v856, 0
        %v876 = vunpack.c.l.b16 %v840
        %v877 = vunpack.c.l.b16 %v841
        %v878 = vunpack.c.l.b16 %v842
        %v879 = vunpack.c.l.b16 %v843
        %v880 = vunpack.c.l.b16 %v844
        %v881 = vunpack.c.l.b16 %v845
        %v882 = vunpack.c.l.b16 %v846
        %v883 = vunpack.c.l.b16 %v847
        %v884 = vunpack.c.l.b16 %v848
        %v885 = vunpack.c.l.b16 %v849
        %v886 = vunpack.c.l.b16 %v850
        %v887 = vunpack.c.l.b16 %v851
        %v888 = vunpack.c.l.b16 %v852
        %v889 = vunpack.c.l.b16 %v853
        %v890 = vunpack.c.l.b16 %v854
        %v891 = vunpack.c.l.b16 %v855
        %v892 = vpack.c.b16 %v877, %v876
        %v893 = vpack.c.b16 %v879, %v878
        %v894 = vpack.c.b16 %v881, %v880
        %v895 = vpack.c.b16 %v883, %v882
        %v896 = vpack.c.b16 %v885, %v884
        %v897 = vpack.c.b16 %v887, %v886
        %v898 = vpack.c.b16 %v889, %v888
        %v899 = vpack.c.b16 %v891, %v890
        %908 = vmatpush.bf16.msra.mxu0 %v899
        %909 = vmatpush.bf16.msra.mxu0 %v898
        %910 = vmatpush.bf16.msra.mxu0 %v897
        %911 = vmatpush.bf16.msra.mxu0 %v896
        %912 = vmatpush.bf16.msra.mxu0 %v895
        %913 = vmatpush.bf16.msra.mxu0 %v894
        %914 = vmatpush.bf16.msra.mxu0 %v893
        %915 = vmatpush.bf16.msra.mxu0 %v892
        %916 = vmatmul.bf16.gmra.mxu0 %v839
        %v917 = vpop.f32.mrf.mxu0
        %v918 = vadd.f32 %v858, %v917
        %v919 = vpop.f32.mrf.mxu0
        %v920 = vadd.f32 %v858, %v919
        %921 = vdwg.mxu0
        %922 = vst [vmem:[%s489] sm:$0xff] %v918
        %923 = vst [vmem:[%s489 + $0x8] sm:$0xff] %v920
        %s924 = sand.u32 %s275, 1
        %s925 = scalar_lea.sflag [#allocation4], %s924
        %s926 = sand.u32 %s275, 1
        %s927 = smul.addr %s926, 16
        %s928 = scalar_lea.vmem [#allocation13], %s927
        // Predicated region
        $region89: #{tpu_custom_call.1} parent=63 // pred_check
          %p929 = pneg %p285
        $region90: #{tpu_custom_call.1} parent=63 // pred_check_branch
          %931 = sbr.rel (%p929) target = $region92
        $region91: #{tpu_custom_call.1} parent=63 // pred_region
          %s932 = smul.u32 2, %s31
          %934 = vsyncadd %s925, 0
          %s935 = smul.addr %s932, 8
          %s936 = scalar_lea.hbm %s11, %s935
          %s937 = sshll.u32 %s928, 4
          %s938 = int_to_ptr.vmem [resolvable:$true] %s937
          %s939 = sshll.u32 %s936, 4
          %s940 = int_to_ptr.hbm [resolvable:$true] %s939
          %945 = dma.vmem_to_hbm [thread:$0]  %s938, 256, %s940, %s925, 128, 128, 8
        $region92: #{tpu_custom_call.1} parent=63 // pred_fallthru
          _
      $region64: #{tpu_custom_call.1} parent=5 // pred_fallthru
        _
      %p946 = scmp.le.s32.totalorder 2, %s26
      // Predicated region
      $region93: #{tpu_custom_call.1} parent=5 // pred_check
        %p947 = pneg %p946
      $region94: #{tpu_custom_call.1} parent=5 // pred_check_branch
        %949 = sbr.rel (%p947) target = $region96
      $region95: #{tpu_custom_call.1} parent=5 // pred_region
        %s950 = ssub.s32 %s26, 2
        // Predicated region
        $region97: #{tpu_custom_call.1} parent=95 // pred_check
          %p951 = pneg %p291
        $region98: #{tpu_custom_call.1} parent=95 // pred_check_branch
          %953 = sbr.rel (%p951) target = $region100
        $region99: #{tpu_custom_call.1} parent=95 // pred_region
          %s954 = sand.u32 %s276, 1
          %s955 = scalar_lea.sflag [#allocation4], %s954
          %s956 = sand.u32 %s276, 1
          %s957 = smul.addr %s956, 16
          %s958 = scalar_lea.vmem [#allocation13], %s957
          %960 = dma.done %s955, 256
        $region100: #{tpu_custom_call.1} parent=95 // pred_fallthru
          _
      $region96: #{tpu_custom_call.1} parent=5 // pred_fallthru
        _
    $region6: #{tpu_custom_call.1} parent=1 // loop_footer
      %s30 = sadd.s32 1, %s26
    $region7: #{tpu_custom_call.1} parent=1 // loop_footer_branch
      %25 = sbr.rel target = $region3
    $region8: #{tpu_custom_call.1} parent=1 // loop_exit
      _
    %961 = vsyncpa [#allocation3], 1
    %s962 = scalar_lea.sflag [#allocation3], 1
    %963 = vsyncpa %s962, 1
    %964 = vsyncpa [#allocation6], 1
    %965 = vsyncpa [#allocation9], 1
    %966 = vsyncpa [#allocation12], 1
    %967 = vsyncpa [#allocation4], 1
    %s968 = scalar_lea.sflag [#allocation4], 1
    %969 = vsyncpa %s968, 1

</llo_original>
